<compile_context>
chip_gen: v5e
topology: v5e:2x2
jax: 0.10.0
libtpu: 0.0.40
codegen_flags: <defaults>
</compile_context>

<pallas_src>
import functools

import jax
import jax.numpy as jnp
from jax import lax
from jax.experimental import pallas as pl
from jax.experimental.pallas import tpu as pltpu


def _dilated_residual_kernel(x_ref, m_ref, wd_ref, bd_ref, w1_ref, b1_ref, o_ref,
                             *, dilation, matmul_dtype):
    # x_ref : (1, C, T)   input (also provides the residual)
    # m_ref : (1, 1, T)   mask, channel 0
    # wd_ref: (C, 3*C)    fused dilated-conv weight [W_k0 | W_k1 | W_k2], (C_out, 3*C_in)
    # bd_ref: (C, 1)
    # w1_ref: (C, C)      1x1 conv weight (C_out, C_in)
    # b1_ref: (C, 1)
    # o_ref : (1, C, T)
    d = dilation
    C = x_ref.shape[1]
    T = x_ref.shape[2]

    x = x_ref[0]                                   # (C, T) f32, residual path
    xb = x.astype(matmul_dtype)                    # matmul operand

    # Dilated k=3 conv taps as lane shifts of x (zero padding at the true sequence edges):
    #   tap0 -> x[:, t-d], tap1 -> x[:, t], tap2 -> x[:, t+d]
    zpad = jnp.zeros((C, d), dtype=matmul_dtype)
    s0 = jnp.concatenate([zpad, xb[:, :T - d]], axis=1)   # looks back d frames
    s2 = jnp.concatenate([xb[:, d:], zpad], axis=1)       # looks ahead d frames
    xcat = jnp.concatenate([s0, xb, s2], axis=0)          # (3C, T) -- single K=3C matmul

    conv = jnp.dot(wd_ref[...], xcat, preferred_element_type=jnp.float32) + bd_ref[...]
    h = jnp.maximum(conv, 0.0).astype(matmul_dtype)       # ReLU
    out = jnp.dot(w1_ref[...], h, preferred_element_type=jnp.float32) + b1_ref[...]
    # TODO(synk): dropout is identity here (module evaluated in inference mode).
    out = x + out                                         # residual (f32)
    out = out * m_ref[0]                                  # mask, broadcast over channels
    o_ref[0] = out.astype(o_ref.dtype)


def dilated_residual_layer(x_ncw, mask_ncw, w_dilated, b_dilated, w_1x1, b_1x1, dilation,
                           *, matmul_dtype=jnp.bfloat16):
    """x_ncw: (N, C, T) f32. mask_ncw: (N, C, T) or None. Weights in PyTorch Conv1d layout."""
    N, C, T = x_ncw.shape
    d = int(dilation)
    if not (0 < d < T):
        raise ValueError(f"dilation must be in (0, T); got d={d}, T={T}")

    # PyTorch Conv1d weight (C_out, C_in, 3) -> fused (C_out, 3*C_in): [W_k0 | W_k1 | W_k2]
    wd_fused = jnp.transpose(w_dilated, (0, 2, 1)).reshape(C, 3 * C).astype(matmul_dtype)
    bd = b_dilated.reshape(C, 1).astype(jnp.float32)
    w1 = w_1x1[:, :, 0].astype(matmul_dtype)               # (C_out, C_in)
    b1 = b_1x1.reshape(C, 1).astype(jnp.float32)
    if mask_ncw is None:
        mask_ch0 = jnp.ones((N, 1, T), dtype=x_ncw.dtype)
    else:
        mask_ch0 = mask_ncw[:, 0:1, :]                     # (N, 1, T), channel 0 only

    kernel = functools.partial(_dilated_residual_kernel, dilation=d, matmul_dtype=matmul_dtype)

    return pl.pallas_call(
        kernel,
        out_shape=jax.ShapeDtypeStruct((N, C, T), x_ncw.dtype),
        grid_spec=pltpu.PrefetchScalarGridSpec(
            num_scalar_prefetch=0,
            grid=(N,),
            in_specs=[
                pl.BlockSpec((1, C, T), lambda n: (n, 0, 0)),     # x (input + residual)
                pl.BlockSpec((1, 1, T), lambda n: (n, 0, 0)),     # mask channel 0
                pl.BlockSpec((C, 3 * C), lambda n: (0, 0)),       # fused dilated weight (resident)
                pl.BlockSpec((C, 1), lambda n: (0, 0)),           # dilated bias
                pl.BlockSpec((C, C), lambda n: (0, 0)),           # 1x1 weight
                pl.BlockSpec((C, 1), lambda n: (0, 0)),           # 1x1 bias
            ],
            out_specs=pl.BlockSpec((1, C, T), lambda n: (n, 0, 0)),
        ),
        compiler_params=pltpu.CompilerParams(
            dimension_semantics=("parallel",),
            vmem_limit_bytes=48 * 1024 * 1024,
        ),
    )(x_ncw, mask_ch0, wd_fused, bd, w1, b1)


def _reference(x_ncw, mask_ncw, w_dilated, b_dilated, w_1x1, b_1x1, dilation):
    """Pure-JAX (f32) reference matching the PyTorch forward (eval mode)."""
    dn = ("NCH", "OIH", "NCH")
    out = lax.conv_general_dilated(
        x_ncw, w_dilated, window_strides=(1,), padding=[(dilation, dilation)],
        rhs_dilation=(dilation,), dimension_numbers=dn)
    out = out + b_dilated[None, :, None]
    out = jnp.maximum(out, 0.0)
    out = lax.conv_general_dilated(
        out, w_1x1, window_strides=(1,), padding=[(0, 0)], dimension_numbers=dn)
    out = out + b_1x1[None, :, None]
    out = x_ncw + out
    if mask_ncw is not None:
        out = out * mask_ncw[:, 0:1, :]
    return out


if __name__ == "__main__":
    key = jax.random.PRNGKey(0)
    N, C, T = 2, 8, 16          # batch, channels (in == out), temporal length
    dilation = 2

    k1, k2, k3, k4, k5, k6 = jax.random.split(key, 6)
    x = jax.random.normal(k1, (N, C, T), dtype=jnp.float32)
    # binary-ish mask (N, C, T); only channel 0 is consumed, as in the module
    mask = (jax.random.uniform(k2, (N, C, T)) > 0.2).astype(jnp.float32)

    # Deterministic parameter init (PyTorch Conv1d weight layouts)
    w_dilated = jax.random.normal(k3, (C, C, 3), dtype=jnp.float32) * 0.1
    b_dilated = jax.random.normal(k4, (C,), dtype=jnp.float32) * 0.1
    w_1x1 = jax.random.normal(k5, (C, C, 1), dtype=jnp.float32) * 0.1
    b_1x1 = jax.random.normal(k6, (C,), dtype=jnp.float32) * 0.1

    out = dilated_residual_layer(x, mask, w_dilated, b_dilated, w_1x1, b_1x1, dilation)
    out = jax.block_until_ready(out)

    ref = _reference(x, mask, w_dilated, b_dilated, w_1x1, b_1x1, dilation)
    assert out.shape == (N, C, T)
    # bf16 matmul operands with f32 accumulation -> slightly looser tolerance than pure f32
    assert jnp.allclose(out, ref, atol=2e-2, rtol=2e-2), "mismatch vs reference"

    print("KERNEL_OK")
</pallas_src>

<mosaic_0001>
module attributes {stable_mosaic.version = 11 : i64} {
  func.func @_dilated_residual_kernel(%arg0: i32, %arg1: memref<1x8x16xf32, #tpu.memory_space<vmem>>, %arg2: memref<1x1x16xf32, #tpu.memory_space<vmem>>, %arg3: memref<8x24xbf16, #tpu.memory_space<vmem>>, %arg4: memref<8x1xf32, #tpu.memory_space<vmem>>, %arg5: memref<8x8xbf16, #tpu.memory_space<vmem>>, %arg6: memref<8x1xf32, #tpu.memory_space<vmem>>, %arg7: memref<1x8x16xf32, #tpu.memory_space<vmem>>) attributes {dimension_semantics = [#tpu.dimension_semantics<parallel>], iteration_bounds = array<i64: 2>, scalar_prefetch = 0 : i64, scratch_operands = 0 : i64, tpu.core_type = #tpu.core_type<tc>, window_params = [{transform_indices = @transform_0, window_bounds = array<i64: 1, 8, 16>}, {transform_indices = @transform_1, window_bounds = array<i64: 1, 1, 16>}, {pipeline_mode = #tpu.pipeline_mode<synchronous>, transform_indices = @transform_2, window_bounds = array<i64: 8, 24>}, {pipeline_mode = #tpu.pipeline_mode<synchronous>, transform_indices = @transform_3, window_bounds = array<i64: 8, 1>}, {pipeline_mode = #tpu.pipeline_mode<synchronous>, transform_indices = @transform_4, window_bounds = array<i64: 8, 8>}, {pipeline_mode = #tpu.pipeline_mode<synchronous>, transform_indices = @transform_5, window_bounds = array<i64: 8, 1>}, {transform_indices = @transform_6, window_bounds = array<i64: 1, 8, 16>}]} {
    %c0 = arith.constant 0 : index
    %c0_0 = arith.constant 0 : index
    %c0_1 = arith.constant 0 : index
    %0 = vector.load %arg1[%c0, %c0_0, %c0_1] : memref<1x8x16xf32, #tpu.memory_space<vmem>>, vector<1x8x16xf32>
    %1 = vector.shape_cast %0 : vector<1x8x16xf32> to vector<8x16xf32>
    %2 = arith.truncf %1 : vector<8x16xf32> to vector<8x16xbf16>
    %cst = arith.constant 0.000000e+00 : bf16
    %3 = vector.broadcast %cst : bf16 to vector<8x2xbf16>
    %4 = vector.extract_strided_slice %2 {offsets = [0, 0], sizes = [8, 14], strides = [1, 1]} : vector<8x16xbf16> to vector<8x14xbf16>
    %5 = tpu.concatenate %3, %4 in 1 : vector<8x2xbf16>, vector<8x14xbf16> -> vector<8x16xbf16>
    %6 = vector.extract_strided_slice %2 {offsets = [0, 2], sizes = [8, 14], strides = [1, 1]} : vector<8x16xbf16> to vector<8x14xbf16>
    %7 = tpu.concatenate %6, %3 in 1 : vector<8x14xbf16>, vector<8x2xbf16> -> vector<8x16xbf16>
    %8 = tpu.concatenate %5, %2, %7 in 0 : vector<8x16xbf16>, vector<8x16xbf16>, vector<8x16xbf16> -> vector<24x16xbf16>
    %c0_2 = arith.constant 0 : index
    %c0_3 = arith.constant 0 : index
    %9 = vector.load %arg3[%c0_2, %c0_3] : memref<8x24xbf16, #tpu.memory_space<vmem>>, vector<8x24xbf16>
    %cst_4 = arith.constant dense<0.000000e+00> : vector<8x16xf32>
    %10 = tpu.matmul %9, %8, %cst_4 {dimension_numbers = #tpu.dot_dimension_numbers<[1], [0], [0], [1], [0, 0, 1, 1], [], []>} : vector<8x24xbf16>, vector<24x16xbf16>, vector<8x16xf32> -> vector<8x16xf32>
    %c0_5 = arith.constant 0 : index
    %c0_6 = arith.constant 0 : index
    %11 = vector.load %arg4[%c0_5, %c0_6] : memref<8x1xf32, #tpu.memory_space<vmem>>, vector<8x1xf32>
    %12 = vector.broadcast %11 : vector<8x1xf32> to vector<8x16xf32>
    %13 = arith.addf %10, %12 : vector<8x16xf32>
    %cst_7 = arith.constant 0.000000e+00 : f32
    %14 = vector.broadcast %cst_7 : f32 to vector<8x16xf32>
    %15 = arith.maximumf %13, %14 : vector<8x16xf32>
    %16 = arith.truncf %15 : vector<8x16xf32> to vector<8x16xbf16>
    %c0_8 = arith.constant 0 : index
    %c0_9 = arith.constant 0 : index
    %17 = vector.load %arg5[%c0_8, %c0_9] : memref<8x8xbf16, #tpu.memory_space<vmem>>, vector<8x8xbf16>
    %cst_10 = arith.constant dense<0.000000e+00> : vector<8x16xf32>
    %18 = tpu.matmul %17, %16, %cst_10 {dimension_numbers = #tpu.dot_dimension_numbers<[1], [0], [0], [1], [0, 0, 1, 1], [], []>} : vector<8x8xbf16>, vector<8x16xbf16>, vector<8x16xf32> -> vector<8x16xf32>
    %c0_11 = arith.constant 0 : index
    %c0_12 = arith.constant 0 : index
    %19 = vector.load %arg6[%c0_11, %c0_12] : memref<8x1xf32, #tpu.memory_space<vmem>>, vector<8x1xf32>
    %20 = vector.broadcast %19 : vector<8x1xf32> to vector<8x16xf32>
    %21 = arith.addf %18, %20 : vector<8x16xf32>
    %22 = arith.addf %1, %21 : vector<8x16xf32>
    %c0_13 = arith.constant 0 : index
    %c0_14 = arith.constant 0 : index
    %c0_15 = arith.constant 0 : index
    %23 = vector.load %arg2[%c0_13, %c0_14, %c0_15] : memref<1x1x16xf32, #tpu.memory_space<vmem>>, vector<1x1x16xf32>
    %24 = vector.shape_cast %23 : vector<1x1x16xf32> to vector<1x16xf32>
    %25 = vector.broadcast %24 : vector<1x16xf32> to vector<8x16xf32>
    %26 = arith.mulf %22, %25 : vector<8x16xf32>
    %c0_16 = arith.constant 0 : index
    %c0_17 = arith.constant 0 : index
    %c0_18 = arith.constant 0 : index
    %27 = vector.load %arg7[%c0_16, %c0_17, %c0_18] : memref<1x8x16xf32, #tpu.memory_space<vmem>>, vector<1x8x16xf32>
    %28 = vector.shape_cast %27 : vector<1x8x16xf32> to vector<8x16xf32>
    %29 = vector.shape_cast %26 : vector<8x16xf32> to vector<1x8x16xf32>
    tpu.vector_store %arg7[%c0_16, %c0_17, %c0_18], %29 {strides = array<i32>} : memref<1x8x16xf32, #tpu.memory_space<vmem>>, vector<1x8x16xf32>,
    return
  }
  func.func @transform_0(%arg0: i32) -> (i32, i32, i32) {
    %c0_i32 = arith.constant 0 : i32
    %c0_i32_0 = arith.constant 0 : i32
    %c0_i32_1 = arith.constant 0 : i32
    return %arg0, %c0_i32, %c0_i32_0 : i32, i32, i32
  }
  func.func @transform_1(%arg0: i32) -> (i32, i32, i32) {
    %c0_i32 = arith.constant 0 : i32
    %c0_i32_0 = arith.constant 0 : i32
    %c0_i32_1 = arith.constant 0 : i32
    return %arg0, %c0_i32, %c0_i32_0 : i32, i32, i32
  }
  func.func @transform_2(%arg0: i32) -> (i32, i32) {
    %c0_i32 = arith.constant 0 : i32
    %c0_i32_0 = arith.constant 0 : i32
    %c0_i32_1 = arith.constant 0 : i32
    return %c0_i32, %c0_i32_0 : i32, i32
  }
  func.func @transform_3(%arg0: i32) -> (i32, i32) {
    %c0_i32 = arith.constant 0 : i32
    %c0_i32_0 = arith.constant 0 : i32
    %c0_i32_1 = arith.constant 0 : i32
    return %c0_i32, %c0_i32_0 : i32, i32
  }
  func.func @transform_4(%arg0: i32) -> (i32, i32) {
    %c0_i32 = arith.constant 0 : i32
    %c0_i32_0 = arith.constant 0 : i32
    %c0_i32_1 = arith.constant 0 : i32
    return %c0_i32, %c0_i32_0 : i32, i32
  }
  func.func @transform_5(%arg0: i32) -> (i32, i32) {
    %c0_i32 = arith.constant 0 : i32
    %c0_i32_0 = arith.constant 0 : i32
    %c0_i32_1 = arith.constant 0 : i32
    return %c0_i32, %c0_i32_0 : i32, i32
  }
  func.func @transform_6(%arg0: i32) -> (i32, i32, i32) {
    %c0_i32 = arith.constant 0 : i32
    %c0_i32_0 = arith.constant 0 : i32
    %c0_i32_1 = arith.constant 0 : i32
    return %arg0, %c0_i32, %c0_i32_0 : i32, i32, i32
  }
}

</mosaic_0001>

<llo_original>
// kernel: tpu_custom_call.1
$region0: #{tpu_custom_call.1}
  #allocation0 [shape = 'u32[]', space=smem, size = 0x4, offset = 0x4, fixed_abs, tag = 'smem constant byte address 0x4 - core index']
  #allocation1 [shape = 'u32[72,128]{1,0:T(1,128)}', space=vmem, size = 0x9000, scoped, tag = 'internal scratch']
  %s0 = inlined_call_operand.vmem [shape: f32[2,8,16], index: 0, kind: input, shape index: {}]
  %s1 = inlined_call_operand.hbm [shape: f32[2,1,16], index: 1, kind: input, shape index: {}]
  %s2 = inlined_call_operand.hbm [shape: bf16[8,24], index: 2, kind: input, shape index: {}]
  %s3 = inlined_call_operand.vmem [shape: f32[8,1], index: 3, kind: input, shape index: {}]
  %s4 = inlined_call_operand.hbm [shape: bf16[8,8], index: 4, kind: input, shape index: {}]
  %s5 = inlined_call_operand.vmem [shape: f32[8,1], index: 5, kind: input, shape index: {}]
  %s6 = inlined_call_operand.hbm [shape: f32[2,8,16], index: 6, kind: output, shape index: {}]
  %s7 = sld [smem:[#allocation0]]
  $region69: #{tpu_custom_call.1} parent=0
    _
  %s9 = ssub.s32 1, %s7
  %s10 = scalar_select 0, %s9, %s7
  $region1: #{tpu_custom_call.1} parent=0
    #allocation2 [shape = 'u8[1024]{0}', space=vmem, size = 0x400, scoped, tag = 'input window, operand 1']
    #allocation3 [shape = 's32[2]{0}', space=sflag, size = 0x8, scoped, tag = 'scoped memory for tpu_custom_call.1']
    #allocation4 [shape = 's32[2]{0}', space=sflag, size = 0x8, scoped, tag = 'scoped memory for tpu_custom_call.1']
    #allocation5 [shape = 'u8[2048]{0}', space=vmem, size = 0x800, scoped, tag = 'input window, operand 2, single buffered']
    #allocation6 [shape = 's32[1]{0}', space=sflag, size = 0x4, scoped, tag = 'scoped memory for tpu_custom_call.1']
    #allocation7 [shape = 'u8[2048]{0}', space=vmem, size = 0x800, scoped, tag = 'input window, operand 4, single buffered']
    #allocation8 [shape = 'u8[8192]{0}', space=vmem, size = 0x2000, scoped, tag = 'output window, operand 0']
    %11 = vsyncpa [#allocation3], 0
    %s12 = scalar_lea.sflag [#allocation3], 1
    %13 = vsyncpa %s12, 0
    %14 = vsyncpa [#allocation6], 0
    %15 = vsyncpa [#allocation4], 0
    %s16 = scalar_lea.sflag [#allocation4], 1
    %17 = vsyncpa %s16, 0
    loop: start=0, step=1, limit=4
    $region2: #{tpu_custom_call.1} parent=1 // loop_pre_header
      _
    $region3: #{tpu_custom_call.1} parent=1 // loop_header
      %s19 = sphi 0, %s23
      %p20 = scmp.ge.s32.totalorder %s19, 4
      %s29 = sphi 0, %s31
      %s32 = sphi 0, %s29
      %s33 = sphi 0, %s32
      %s49 = sphi 0, %s33
      %s55 = sphi 0, %s57
      %s58 = sphi 0, %s55
      %s59 = sphi 0, %s58
      %s75 = sphi 0, %s59
      %s79 = sphi 0, %s79
      %s81 = sphi 0, %s79
      %s82 = sphi 0, %s81
      %s96 = sphi 0, %s82
      %s100 = sphi 0, %s100
      %s102 = sphi 0, %s100
      %s103 = sphi 0, %s102
      %s117 = sphi 0, %s103
      %s121 = sphi 0, %s121
      %s123 = sphi 0, %s121
      %s124 = sphi 0, %s123
      %s138 = sphi 0, %s124
      %s142 = sphi 0, %s142
      %s144 = sphi 0, %s142
      %s145 = sphi 0, %s144
      %s159 = sphi 0, %s145
      %s165 = sphi 0, %s167
      %s168 = sphi 0, %s165
      %s169 = sphi 0, %s168
      %s185 = sphi 0, %s169
    $region4: #{tpu_custom_call.1} parent=1 // loop_header_branch
      %22 = sbr.rel (%p20) target = $region8
    $region5: #{tpu_custom_call.1} parent=1 // loop_body
      %s24 = ssub.s32 %s19, 1
      %s25 = ssub.s32 %s19, 2
      %s26 = sadd.s32 %s19, 1
      %s27 = ssub.s32 %s19, %s26
      %p28 = scmp.eq.s32.totalorder %s27, 0
      %s30 = sadd.s32 %s29, 1
      %s31 = scalar_select %p28, %s29, %s30
      %p34 = pneg %p28
      %p35 = scmp.eq.s32.totalorder %s19, 1
      %p36 = por %p34, %p35
      %p37 = scmp.ne.s32.totalorder %s29, %s32
      %p38 = scmp.eq.s32.totalorder %s19, 0
      %p39 = por %p37, %p38
      %p40 = scmp.ne.s32.totalorder %s29, %s32
      %p41 = scmp.eq.s32.totalorder %s24, 1
      %p42 = por %p40, %p41
      %p43 = scmp.ne.s32.totalorder %s32, %s33
      %p44 = scmp.eq.s32.totalorder %s24, 0
      %p45 = por %p43, %p44
      %p46 = scmp.ne.s32.totalorder %s32, %s33
      %p47 = scmp.eq.s32.totalorder %s25, 1
      %p48 = por %p46, %p47
      %p50 = scmp.ne.s32.totalorder %s33, %s49
      %p51 = scmp.eq.s32.totalorder %s25, 0
      %p52 = por %p50, %p51
      %s53 = ssub.s32 %s19, %s26
      %p54 = scmp.eq.s32.totalorder %s53, 0
      %s56 = sadd.s32 %s55, 1
      %s57 = scalar_select %p54, %s55, %s56
      %p60 = pneg %p54
      %p61 = scmp.eq.s32.totalorder %s19, 1
      %p62 = por %p60, %p61
      %p63 = scmp.ne.s32.totalorder %s55, %s58
      %p64 = scmp.eq.s32.totalorder %s19, 0
      %p65 = por %p63, %p64
      %p66 = scmp.ne.s32.totalorder %s55, %s58
      %p67 = scmp.eq.s32.totalorder %s24, 1
      %p68 = por %p66, %p67
      %p69 = scmp.ne.s32.totalorder %s58, %s59
      %p70 = scmp.eq.s32.totalorder %s24, 0
      %p71 = por %p69, %p70
      %p72 = scmp.ne.s32.totalorder %s58, %s59
      %p73 = scmp.eq.s32.totalorder %s25, 1
      %p74 = por %p72, %p73
      %p76 = scmp.ne.s32.totalorder %s59, %s75
      %p77 = scmp.eq.s32.totalorder %s25, 0
      %p78 = por %p76, %p77
      %s80 = sadd.s32 %s79, 1
      %p83 = scmp.eq.s32.totalorder %s19, 1
      %p84 = scmp.ne.s32.totalorder %s79, %s81
      %p85 = scmp.eq.s32.totalorder %s19, 0
      %p86 = por %p84, %p85
      %p87 = scmp.ne.s32.totalorder %s79, %s81
      %p88 = scmp.eq.s32.totalorder %s24, 1
      %p89 = por %p87, %p88
      %p90 = scmp.ne.s32.totalorder %s81, %s82
      %p91 = scmp.eq.s32.totalorder %s24, 0
      %p92 = por %p90, %p91
      %p93 = scmp.ne.s32.totalorder %s81, %s82
      %p94 = scmp.eq.s32.totalorder %s25, 1
      %p95 = por %p93, %p94
      %p97 = scmp.ne.s32.totalorder %s82, %s96
      %p98 = scmp.eq.s32.totalorder %s25, 0
      %p99 = por %p97, %p98
      %s101 = sadd.s32 %s100, 1
      %p104 = scmp.eq.s32.totalorder %s19, 1
      %p105 = scmp.ne.s32.totalorder %s100, %s102
      %p106 = scmp.eq.s32.totalorder %s19, 0
      %p107 = por %p105, %p106
      %p108 = scmp.ne.s32.totalorder %s100, %s102
      %p109 = scmp.eq.s32.totalorder %s24, 1
      %p110 = por %p108, %p109
      %p111 = scmp.ne.s32.totalorder %s102, %s103
      %p112 = scmp.eq.s32.totalorder %s24, 0
      %p113 = por %p111, %p112
      %p114 = scmp.ne.s32.totalorder %s102, %s103
      %p115 = scmp.eq.s32.totalorder %s25, 1
      %p116 = por %p114, %p115
      %p118 = scmp.ne.s32.totalorder %s103, %s117
      %p119 = scmp.eq.s32.totalorder %s25, 0
      %p120 = por %p118, %p119
      %s122 = sadd.s32 %s121, 1
      %p125 = scmp.eq.s32.totalorder %s19, 1
      %p126 = scmp.ne.s32.totalorder %s121, %s123
      %p127 = scmp.eq.s32.totalorder %s19, 0
      %p128 = por %p126, %p127
      %p129 = scmp.ne.s32.totalorder %s121, %s123
      %p130 = scmp.eq.s32.totalorder %s24, 1
      %p131 = por %p129, %p130
      %p132 = scmp.ne.s32.totalorder %s123, %s124
      %p133 = scmp.eq.s32.totalorder %s24, 0
      %p134 = por %p132, %p133
      %p135 = scmp.ne.s32.totalorder %s123, %s124
      %p136 = scmp.eq.s32.totalorder %s25, 1
      %p137 = por %p135, %p136
      %p139 = scmp.ne.s32.totalorder %s124, %s138
      %p140 = scmp.eq.s32.totalorder %s25, 0
      %p141 = por %p139, %p140
      %s143 = sadd.s32 %s142, 1
      %p146 = scmp.eq.s32.totalorder %s19, 1
      %p147 = scmp.ne.s32.totalorder %s142, %s144
      %p148 = scmp.eq.s32.totalorder %s19, 0
      %p149 = por %p147, %p148
      %p150 = scmp.ne.s32.totalorder %s142, %s144
      %p151 = scmp.eq.s32.totalorder %s24, 1
      %p152 = por %p150, %p151
      %p153 = scmp.ne.s32.totalorder %s144, %s145
      %p154 = scmp.eq.s32.totalorder %s24, 0
      %p155 = por %p153, %p154
      %p156 = scmp.ne.s32.totalorder %s144, %s145
      %p157 = scmp.eq.s32.totalorder %s25, 1
      %p158 = por %p156, %p157
      %p160 = scmp.ne.s32.totalorder %s145, %s159
      %p161 = scmp.eq.s32.totalorder %s25, 0
      %p162 = por %p160, %p161
      %s163 = ssub.s32 %s19, %s26
      %p164 = scmp.eq.s32.totalorder %s163, 0
      %s166 = sadd.s32 %s165, 1
      %s167 = scalar_select %p164, %s165, %s166
      %p170 = pneg %p164
      %p171 = scmp.eq.s32.totalorder %s19, 1
      %p172 = por %p170, %p171
      %p173 = scmp.ne.s32.totalorder %s165, %s168
      %p174 = scmp.eq.s32.totalorder %s19, 0
      %p175 = por %p173, %p174
      %p176 = scmp.ne.s32.totalorder %s165, %s168
      %p177 = scmp.eq.s32.totalorder %s24, 1
      %p178 = por %p176, %p177
      %p179 = scmp.ne.s32.totalorder %s168, %s169
      %p180 = scmp.eq.s32.totalorder %s24, 0
      %p181 = por %p179, %p180
      %p182 = scmp.ne.s32.totalorder %s168, %s169
      %p183 = scmp.eq.s32.totalorder %s25, 1
      %p184 = por %p182, %p183
      %p186 = scmp.ne.s32.totalorder %s169, %s185
      %p187 = scmp.eq.s32.totalorder %s25, 0
      %p188 = por %p186, %p187
      %p189 = scmp.le.s32.totalorder 1, %s19
      %p190 = scmp.lt.s32.totalorder %s19, 3
      %p191 = pnand %p189, %p190
      %p192 = pneg %p191
      // Predicated region
      $region9: #{tpu_custom_call.1} parent=5 // pred_check
        _
      $region10: #{tpu_custom_call.1} parent=5 // pred_check_branch
        %194 = sbr.rel (%p191) target = $region12
      $region11: #{tpu_custom_call.1} parent=5 // pred_region
        %s195 = ssub.s32 %s19, 1
        // Predicated region
        $region13: #{tpu_custom_call.1} parent=11 // pred_check
          %p196 = pneg %p92
        $region14: #{tpu_custom_call.1} parent=11 // pred_check_branch
          %198 = sbr.rel (%p196) target = $region16
        $region15: #{tpu_custom_call.1} parent=11 // pred_region
          %200 = vsyncadd [#allocation6], 0
          %s202 = sshll.u32 %s2, 4
          %s203 = int_to_ptr.hbm [resolvable:$true] %s202
          %s204 = sshll.u32 [#allocation5], 4
          %s205 = int_to_ptr.vmem [resolvable:$true] %s204
          %207 = dma.hbm_to_vmem [thread:$0]  %s203, 64, %s205, [#allocation6]
        $region16: #{tpu_custom_call.1} parent=11 // pred_fallthru
          _
        // Predicated region
        $region17: #{tpu_custom_call.1} parent=11 // pred_check
          %p208 = pneg %p113
        $region18: #{tpu_custom_call.1} parent=11 // pred_check_branch
          %210 = sbr.rel (%p208) target = $region20
        $region19: #{tpu_custom_call.1} parent=11 // pred_region
          _
        $region20: #{tpu_custom_call.1} parent=11 // pred_fallthru
          _
        // Predicated region
        $region21: #{tpu_custom_call.1} parent=11 // pred_check
          %p211 = pneg %p134
        $region22: #{tpu_custom_call.1} parent=11 // pred_check_branch
          %213 = sbr.rel (%p211) target = $region24
        $region23: #{tpu_custom_call.1} parent=11 // pred_region
          %215 = vsyncadd [#allocation6], 0
          %s217 = sshll.u32 %s4, 4
          %s218 = int_to_ptr.hbm [resolvable:$true] %s217
          %s219 = sshll.u32 [#allocation7], 4
          %s220 = int_to_ptr.vmem [resolvable:$true] %s219
          %222 = dma.hbm_to_vmem [thread:$0]  %s218, 64, %s220, [#allocation6]
        $region24: #{tpu_custom_call.1} parent=11 // pred_fallthru
          _
        // Predicated region
        $region25: #{tpu_custom_call.1} parent=11 // pred_check
          %p223 = pneg %p155
        $region26: #{tpu_custom_call.1} parent=11 // pred_check_branch
          %225 = sbr.rel (%p223) target = $region28
        $region27: #{tpu_custom_call.1} parent=11 // pred_region
          _
        $region28: #{tpu_custom_call.1} parent=11 // pred_fallthru
          _
      $region12: #{tpu_custom_call.1} parent=5 // pred_fallthru
        _
      %p226 = scmp.lt.s32.totalorder %s19, 2
      // Predicated region
      $region29: #{tpu_custom_call.1} parent=5 // pred_check
        %p227 = pneg %p226
      $region30: #{tpu_custom_call.1} parent=5 // pred_check_branch
        %229 = sbr.rel (%p227) target = $region32
      $region31: #{tpu_custom_call.1} parent=5 // pred_region
        // Predicated region
        $region33: #{tpu_custom_call.1} parent=31 // pred_check
          %p230 = pneg %p39
        $region34: #{tpu_custom_call.1} parent=31 // pred_check_branch
          %232 = sbr.rel (%p230) target = $region36
        $region35: #{tpu_custom_call.1} parent=31 // pred_region
          %p233 = scmp.lt.s32.totalorder %s19, 1
          %s234 = scalar_select %p233, %s19, 1
          %s235 = smul.addr %s234, 8
          %s236 = scalar_lea.vmem %s0, %s235
        $region36: #{tpu_custom_call.1} parent=31 // pred_fallthru
          _
        // Predicated region
        $region37: #{tpu_custom_call.1} parent=31 // pred_check
          %p237 = pneg %p65
        $region38: #{tpu_custom_call.1} parent=31 // pred_check_branch
          %239 = sbr.rel (%p237) target = $region40
        $region39: #{tpu_custom_call.1} parent=31 // pred_region
          %s240 = sand.u32 %s55, 1
          %s241 = scalar_lea.sflag [#allocation3], %s240
          %s242 = sand.u32 %s55, 1
          %s243 = scalar_lea.vmem [#allocation2], %s242
          %245 = vsyncadd %s241, 0
          %s246 = scalar_lea.hbm %s1, %s19
          %s248 = sshll.u32 %s246, 4
          %s249 = int_to_ptr.hbm [resolvable:$true] %s248
          %s250 = sshll.u32 %s243, 4
          %s251 = int_to_ptr.vmem [resolvable:$true] %s250
          %253 = dma.hbm_to_vmem [thread:$0]  %s249, 16, %s251, %s241
        $region40: #{tpu_custom_call.1} parent=31 // pred_fallthru
          _
      $region32: #{tpu_custom_call.1} parent=5 // pred_fallthru
        _
      %p254 = scmp.le.s32.totalorder 1, %s19
      %p255 = scmp.lt.s32.totalorder %s19, 3
      %p256 = pnand %p254, %p255
      %p257 = pneg %p256
      // Predicated region
      $region41: #{tpu_custom_call.1} parent=5 // pred_check
        _
      $region42: #{tpu_custom_call.1} parent=5 // pred_check_branch
        %259 = sbr.rel (%p256) target = $region44
      $region43: #{tpu_custom_call.1} parent=5 // pred_region
        %s260 = ssub.s32 %s19, 1
        %s261 = sand.u32 %s58, 1
        %s262 = scalar_lea.sflag [#allocation3], %s261
        %s263 = sand.u32 %s58, 1
        %s264 = scalar_lea.vmem [#allocation2], %s263
        // Predicated region
        $region45: #{tpu_custom_call.1} parent=43 // pred_check
          %p265 = pneg %p71
        $region46: #{tpu_custom_call.1} parent=43 // pred_check_branch
          %267 = sbr.rel (%p265) target = $region48
        $region47: #{tpu_custom_call.1} parent=43 // pred_region
          %269 = dma.done %s262, 16
        $region48: #{tpu_custom_call.1} parent=43 // pred_fallthru
          _
        // Predicated region
        $region49: #{tpu_custom_call.1} parent=43 // pred_check
          %p270 = pneg %p92
        $region50: #{tpu_custom_call.1} parent=43 // pred_check_branch
          %272 = sbr.rel (%p270) target = $region52
        $region51: #{tpu_custom_call.1} parent=43 // pred_region
          %274 = dma.done [#allocation6], 64
        $region52: #{tpu_custom_call.1} parent=43 // pred_fallthru
          _
        // Predicated region
        $region53: #{tpu_custom_call.1} parent=43 // pred_check
          %p275 = pneg %p134
        $region54: #{tpu_custom_call.1} parent=43 // pred_check_branch
          %277 = sbr.rel (%p275) target = $region56
        $region55: #{tpu_custom_call.1} parent=43 // pred_region
          %279 = dma.done [#allocation6], 64
        $region56: #{tpu_custom_call.1} parent=43 // pred_fallthru
          _
        %p280 = scmp.lt.s32.totalorder %s24, 1
        %s281 = scalar_select %p280, %s24, 1
        %s282 = smul.addr %s281, 8
        %s283 = scalar_lea.vmem %s0, %s282
        %p284 = pneg %p45
        %p285 = pneg %p42
        %s286 = sand.u32 %s58, 1
        %s287 = scalar_lea.sflag [#allocation3], %s286
        %s288 = sand.u32 %s58, 1
        %s289 = scalar_lea.vmem [#allocation2], %s288
        %p290 = pneg %p71
        %p291 = pneg %p68
        %p292 = pneg %p92
        %p293 = pneg %p89
        %p294 = pneg %p113
        %p295 = pneg %p110
        %p296 = pneg %p134
        %p297 = pneg %p131
        %p298 = pneg %p155
        %p299 = pneg %p152
        %p300 = pneg %p181
        %p301 = pneg %p178
        %s302 = sand.u32 %s168, 1
        %s303 = scalar_lea.sflag [#allocation4], %s302
        %s304 = sand.u32 %s168, 1
        %s305 = smul.addr %s304, 8
        %s306 = scalar_lea.vmem [#allocation8], %s305
        %p307 = scmp.lt.s32.totalorder %s24, 1
        %s308 = scalar_select %p307, %s24, 1
        %s309 = smul.addr %s308, 8
        %s310 = scalar_lea.vmem %s0, %s309
        %v312 = vld [vmem:[%s310] sm:$0xff]
        %v313 = vpack.c.bf16 %v312, %v312
        %v315 = vunpack.c.l.b16 %v313
        %v316 = vpack.c.b16 %v315, %v315
        %317 = vrot.lane.b32.xlu0 %v316, 2
        %v318 = vpop.permute.xlu0 %317
        %vm319 = vcmask 15360
        %v322 = vsel %vm319, 0, %v318
        %323 = vrot.lane.b32.xlu0 %v316, 126
        %v324 = vpop.permute.xlu0 %323
        %vm325 = vcmask 113664
        %v327 = vsel %vm325, %v324, 0
        %vm328 = vcmask 1043456
        %v330 = vsel %vm328, %v322, %v316
        %v332 = vld [vmem:[#allocation5] sm:$0xf]
        %v333 = vld [vmem:[%s3] sm:$0xff]
        %335 = vset.pattern.permute.xlu0 0
        %336 = vperm.xlu0 %335, %v333
        %v337 = vpop.permute.xlu0 %336
        %vm339 = vcmask 195584
        %v341 = vsel %vm339, %v332, 0
        %v343 = vsel %vm328, %v327, 0
        %345 = vmatpush.bf16.msra.mxu0 0
        %346 = vmatpush.bf16.msra.mxu0 0
        %347 = vmatpush.bf16.msra.mxu0 0
        %348 = vmatpush.bf16.msra.mxu0 0
        %349 = vmatpush.bf16.msra.mxu0 0
        %350 = vmatpush.bf16.msra.mxu0 0
        %351 = vmatpush.bf16.msra.mxu0 %v343
        %352 = vmatpush.bf16.msra.mxu0 %v330
        %353 = vmatmul.bf16.gmra.mxu0 %v341
        %v354 = vpop.f32.mrf.mxu0
        %v355 = vadd.f32 %v337, %v354
        %v356 = vpop.f32.mrf.mxu0
        %357 = vdwg.mxu0
        %v358 = vmax.f32 %v355, 0.0
        %v359 = vpack.c.bf16 %v358, %v358
        %v360 = vld [vmem:[#allocation7] sm:$0xf]
        %v361 = vld [vmem:[%s5] sm:$0xff]
        %363 = vset.pattern.permute.xlu0 0
        %364 = vperm.xlu0 %363, %v361
        %v365 = vpop.permute.xlu0 %364
        %vm367 = vcmask 64512
        %v369 = vsel %vm367, %v360, 0
        %v372 = vsel %vm328, %v359, 0
        %374 = vmatpush.bf16.msra.mxu0 0
        %375 = vmatpush.bf16.msra.mxu0 0
        %376 = vmatpush.bf16.msra.mxu0 0
        %377 = vmatpush.bf16.msra.mxu0 0
        %378 = vmatpush.bf16.msra.mxu0 0
        %379 = vmatpush.bf16.msra.mxu0 0
        %380 = vmatpush.bf16.msra.mxu0 0
        %381 = vmatpush.bf16.msra.mxu0 %v372
        %382 = vmatmul.bf16.gmra.mxu0 %v369
        %v383 = vpop.f32.mrf.mxu0
        %v384 = vadd.f32 %v365, %v383
        %v385 = vpop.f32.mrf.mxu0
        %386 = vdwg.mxu0
        %v387 = vadd.f32 %v312, %v384
        %v388 = vld [vmem:[%s264] sm:$0x1]
        %v390 = vperm.slane %v388, 0
        %v392 = vmul.f32 %v387, %v390
        %vm393 = vcmask 130048
        %394 = vst.msk [vmem:[%s306] sm:$0xff] %vm393, %v392
        %s395 = sand.u32 %s168, 1
        %s396 = scalar_lea.sflag [#allocation4], %s395
        %s397 = sand.u32 %s168, 1
        %s398 = smul.addr %s397, 8
        %s399 = scalar_lea.vmem [#allocation8], %s398
        // Predicated region
        $region57: #{tpu_custom_call.1} parent=43 // pred_check
          %p400 = pneg %p178
        $region58: #{tpu_custom_call.1} parent=43 // pred_check_branch
          %402 = sbr.rel (%p400) target = $region60
        $region59: #{tpu_custom_call.1} parent=43 // pred_region
          %404 = vsyncadd %s396, 0
          %s405 = smul.addr %s24, 8
          %s406 = scalar_lea.hbm %s6, %s405
          %s408 = sshll.u32 %s399, 4
          %s409 = int_to_ptr.vmem [resolvable:$true] %s408
          %s410 = sshll.u32 %s406, 4
          %s411 = int_to_ptr.hbm [resolvable:$true] %s410
          %413 = dma.vmem_to_hbm [thread:$0]  %s409, 128, %s411, %s396
        $region60: #{tpu_custom_call.1} parent=43 // pred_fallthru
          _
      $region44: #{tpu_custom_call.1} parent=5 // pred_fallthru
        _
      %p414 = scmp.le.s32.totalorder 2, %s19
      // Predicated region
      $region61: #{tpu_custom_call.1} parent=5 // pred_check
        %p415 = pneg %p414
      $region62: #{tpu_custom_call.1} parent=5 // pred_check_branch
        %417 = sbr.rel (%p415) target = $region64
      $region63: #{tpu_custom_call.1} parent=5 // pred_region
        %s418 = ssub.s32 %s19, 2
        // Predicated region
        $region65: #{tpu_custom_call.1} parent=63 // pred_check
          %p419 = pneg %p184
        $region66: #{tpu_custom_call.1} parent=63 // pred_check_branch
          %421 = sbr.rel (%p419) target = $region68
        $region67: #{tpu_custom_call.1} parent=63 // pred_region
          %s422 = sand.u32 %s169, 1
          %s423 = scalar_lea.sflag [#allocation4], %s422
          %s424 = sand.u32 %s169, 1
          %s425 = smul.addr %s424, 8
          %s426 = scalar_lea.vmem [#allocation8], %s425
          %428 = dma.done %s423, 128
        $region68: #{tpu_custom_call.1} parent=63 // pred_fallthru
          _
      $region64: #{tpu_custom_call.1} parent=5 // pred_fallthru
        _
    $region6: #{tpu_custom_call.1} parent=1 // loop_footer
      %s23 = sadd.s32 1, %s19
    $region7: #{tpu_custom_call.1} parent=1 // loop_footer_branch
      %18 = sbr.rel target = $region3
    $region8: #{tpu_custom_call.1} parent=1 // loop_exit
      _
    %429 = vsyncpa [#allocation3], 1
    %s430 = scalar_lea.sflag [#allocation3], 1
    %431 = vsyncpa %s430, 1
    %432 = vsyncpa [#allocation6], 1
    %433 = vsyncpa [#allocation4], 1
    %s434 = scalar_lea.sflag [#allocation4], 1
    %435 = vsyncpa %s434, 1

</llo_original>
